<compile_context>
chip_gen: v7x
topology: tpu7x:2x2x1
jax: 0.10.0
libtpu: 0.0.40
codegen_flags: <defaults>
</compile_context>

<pallas_src>
import jax
import jax.numpy as jnp
from jax import lax
from jax.experimental import pallas as pl
from jax.experimental.pallas import tpu as pltpu


# f32 elements kept resident per in-kernel lane chunk (~16 vregs of input).
_CHUNK_ELEMS = 16 * 1024


def _spatial_attn_kernel(params_ref, x_ref, o_ref):
    # params_ref: scalar-prefetch SMEM (3,) f32 = [w_max, w_mean, bias]
    # x_ref / o_ref block: (tile_b, C, tile_n) f32
    w_max = params_ref[0]
    w_mean = params_ref[1]
    bias = params_ref[2]

    tile_b, c, tile_n = x_ref.shape
    inv_c = 1.0 / c

    # Lane-chunk so the live vreg set stays ~16-32 vregs even for MiB blocks.
    chunk = (_CHUNK_ELEMS // (tile_b * c)) // 128 * 128
    chunk = max(128, min(tile_n, chunk))
    n_full = tile_n // chunk
    rem = tile_n - n_full * chunk

    def process(start, size):
        xc = x_ref[:, :, pl.ds(start, size)]                      # (tile_b, C, size)
        x_max = jnp.max(xc, axis=1, keepdims=True)                # (tile_b, 1, size)
        x_mean = jnp.sum(xc, axis=1, keepdims=True) * inv_c       # (tile_b, 1, size)
        # Folded Conv1d(2->1,k=1) + BN, then ReLU, then sigmoid.
        pre = jnp.maximum(w_max * x_max + w_mean * x_mean + bias, 0.0)
        # Sigmoid: exp on EUP, approx reciprocal on EUP (keeps VALU slots clear).
        gate = pl.reciprocal(1.0 + jnp.exp(-pre), approx=True)
        o_ref[:, :, pl.ds(start, size)] = (gate * xc).astype(o_ref.dtype)

    def body(i, carry):
        start = pl.multiple_of(i * chunk, chunk)
        process(start, chunk)
        return carry

    lax.fori_loop(0, n_full, body, 0, unroll=True)
    if rem > 0:                     # static remainder (only if tile_n % chunk != 0)
        process(n_full * chunk, rem)


def spatial_attention_forward(x, params, *, target_block_bytes=2 << 20):
    """x: (B, C, N) float32; params: (3,) float32 folded conv+BN scalars."""
    B, C, N = x.shape
    itemsize = jnp.dtype(x.dtype).itemsize

    # --- N tiling: largest multiple of 128 that divides N and keeps a single-
    # batch block near target_block_bytes (multi-MiB so DMA dominates the
    # ~0.35us fixed per-step overhead). Fall back to full N if not 128-aligned.
    if N % 128 == 0:
        max_lanes = max(128, (target_block_bytes // (C * itemsize)) // 128 * 128)
        tile_n = min(N, max_lanes)
        while N % tile_n != 0:          # keep an exact grid (no ragged tail)
            tile_n -= 128
    else:
        tile_n = N

    # --- B tiling: if a single-batch block is still well under target, batch
    # several B per block (largest divisor of B that fits the byte target).
    tile_b = 1
    for cand in range(B, 0, -1):
        if B % cand == 0 and cand * C * tile_n * itemsize <= target_block_bytes:
            tile_b = cand
            break

    grid = (B // tile_b, N // tile_n)
    block_bytes = tile_b * C * tile_n * itemsize

    # Double-buffered input + output (~4x block bytes) plus headroom; only
    # override the scoped-VMEM default when large blocks actually need it.
    vmem_needed = 4 * block_bytes + (2 << 20)
    vmem_limit = vmem_needed if vmem_needed > (16 << 20) else None

    cost = pl.CostEstimate(
        flops=3 * B * C * N,                    # max + sum reduce + rescale
        transcendentals=B * N,                  # one exp per output column
        bytes_accessed=2 * B * C * N * itemsize)

    return pl.pallas_call(
        _spatial_attn_kernel,
        out_shape=jax.ShapeDtypeStruct((B, C, N), x.dtype),
        grid_spec=pltpu.PrefetchScalarGridSpec(
            num_scalar_prefetch=1,              # folded scalars -> SMEM
            grid=grid,
            in_specs=[
                pl.BlockSpec((tile_b, C, tile_n), lambda b, n, p: (b, 0, n)),
            ],
            out_specs=pl.BlockSpec((tile_b, C, tile_n), lambda b, n, p: (b, 0, n)),
        ),
        compiler_params=pltpu.CompilerParams(
            dimension_semantics=("parallel", "parallel"),
            vmem_limit_bytes=vmem_limit),
        cost_estimate=cost,
    )(params, x)


def fold_params(w_conv, gamma, beta, run_mean, run_var, eps=1e-5):
    """Fold Conv1d(2->1, k=1, bias=False) + eval-mode BatchNorm1d(1) into
    [w_max_scaled, w_mean_scaled, bias]."""
    scale = gamma / jnp.sqrt(run_var + eps)        # (1,)
    w_max = scale * w_conv[0, 0, 0]                # weight on the channel-max map
    w_mean = scale * w_conv[0, 1, 0]               # weight on the channel-mean map
    bias = beta - scale * run_mean
    return jnp.concatenate([w_max, w_mean, bias]).astype(jnp.float32)  # (3,)


def reference_forward(x, w_conv, gamma, beta, run_mean, run_var, eps=1e-5):
    """Pure-JAX reference mirroring the PyTorch forward (eval-mode BN)."""
    out1 = jnp.mean(x, axis=1, keepdims=True)                      # (B, 1, N)
    out2 = jnp.max(x, axis=1, keepdims=True)                       # (B, 1, N)
    out = jnp.concatenate([out2, out1], axis=1)                    # (B, 2, N)
    y = jnp.einsum('oi,bin->bon', w_conv[:, :, 0], out)            # Conv1d k=1
    y = gamma[None, :, None] * (y - run_mean[None, :, None]) \
        / jnp.sqrt(run_var[None, :, None] + eps) + beta[None, :, None]
    y = jax.nn.relu(y)
    y = jax.nn.sigmoid(y)
    return y * x


if __name__ == "__main__":
    B, C, N = 2, 32, 512          # N multiple of 128 -> lane-dense blocks

    key = jax.random.PRNGKey(0)
    k = jax.random.split(key, 6)

    x = jax.random.normal(k[0], (B, C, N), dtype=jnp.float32)

    # Conv1d(in=2, out=1, kernel_size=1, bias=False) weight: (1, 2, 1)
    w_conv = 0.5 * jax.random.normal(k[1], (1, 2, 1), dtype=jnp.float32)

    # BatchNorm1d(1) parameters.
    # TODO(synk): training-mode batch statistics are not reproduced; eval-mode
    # running stats are folded into the conv instead.
    gamma = 1.0 + 0.1 * jax.random.normal(k[2], (1,), dtype=jnp.float32)
    beta = 0.1 * jax.random.normal(k[3], (1,), dtype=jnp.float32)
    run_mean = 0.1 * jax.random.normal(k[4], (1,), dtype=jnp.float32)
    run_var = jnp.abs(jax.random.normal(k[5], (1,), dtype=jnp.float32)) + 0.5

    params = fold_params(w_conv, gamma, beta, run_mean, run_var)

    out = spatial_attention_forward(x, params)
    out = jax.block_until_ready(out)

    ref = reference_forward(x, w_conv, gamma, beta, run_mean, run_var)
    assert out.shape == (B, C, N)
    # Tolerance accounts for the ~2^-12 relative error of the EUP approx
    # reciprocal in the sigmoid gate (error is proportional to |out|).
    assert jnp.allclose(out, ref, atol=1e-4, rtol=2e-3), "mismatch vs reference"

    print("KERNEL_OK")
</pallas_src>

<mosaic_0001>
module attributes {stable_mosaic.version = 11 : i64} {
  func.func @_spatial_attn_kernel(%arg0: i32, %arg1: i32, %arg2: memref<3xf32, #tpu.memory_space<smem>>, %arg3: memref<2x32x512xf32, #tpu.memory_space<vmem>>, %arg4: memref<2x32x512xf32, #tpu.memory_space<vmem>>) attributes {dimension_semantics = [#tpu.dimension_semantics<parallel>, #tpu.dimension_semantics<parallel>], iteration_bounds = array<i64: 1, 1>, scalar_prefetch = 1 : i64, scratch_operands = 0 : i64, tpu.core_type = #tpu.core_type<tc>, window_params = [{transform_indices = @transform_0, window_bounds = array<i64: 2, 32, 512>}, {transform_indices = @transform_1, window_bounds = array<i64: 2, 32, 512>}]} {
    %c0 = arith.constant 0 : index
    %0 = memref.load %arg2[%c0] : memref<3xf32, #tpu.memory_space<smem>>
    %c1 = arith.constant 1 : index
    %1 = memref.load %arg2[%c1] : memref<3xf32, #tpu.memory_space<smem>>
    %c2 = arith.constant 2 : index
    %2 = memref.load %arg2[%c2] : memref<3xf32, #tpu.memory_space<smem>>
    %c0_i32 = arith.constant 0 : i32
    %c256_i32 = arith.constant 256 : i32
    %3 = arith.muli %c0_i32, %c256_i32 : i32
    %4 = tpu.assume_multiple %3, 256 : i32
    %c0_0 = arith.constant 0 : index
    %c0_1 = arith.constant 0 : index
    %5 = arith.index_cast %4 : i32 to index
    %6 = vector.load %arg3[%c0_0, %c0_1, %5] : memref<2x32x512xf32, #tpu.memory_space<vmem>>, vector<2x32x256xf32>
    %cst = arith.constant dense<0xFF800000> : vector<2x256xf32>
    %7 = vector.multi_reduction <maximumf>, %6, %cst [1] : vector<2x32x256xf32> to vector<2x256xf32>
    %8 = vector.shape_cast %7 : vector<2x256xf32> to vector<2x1x256xf32>
    %cst_2 = arith.constant dense<0.000000e+00> : vector<2x256xf32>
    %9 = vector.multi_reduction <add>, %6, %cst_2 [1] : vector<2x32x256xf32> to vector<2x256xf32>
    %10 = vector.shape_cast %9 : vector<2x256xf32> to vector<2x1x256xf32>
    %cst_3 = arith.constant 3.125000e-02 : f32
    %11 = vector.broadcast %cst_3 : f32 to vector<2x1x256xf32>
    %12 = arith.mulf %10, %11 : vector<2x1x256xf32>
    %13 = vector.broadcast %0 : f32 to vector<2x1x256xf32>
    %14 = arith.mulf %13, %8 : vector<2x1x256xf32>
    %15 = vector.broadcast %1 : f32 to vector<2x1x256xf32>
    %16 = arith.mulf %15, %12 : vector<2x1x256xf32>
    %17 = arith.addf %14, %16 : vector<2x1x256xf32>
    %18 = vector.broadcast %2 : f32 to vector<2x1x256xf32>
    %19 = arith.addf %17, %18 : vector<2x1x256xf32>
    %cst_4 = arith.constant 0.000000e+00 : f32
    %20 = vector.broadcast %cst_4 : f32 to vector<2x1x256xf32>
    %21 = arith.maximumf %19, %20 : vector<2x1x256xf32>
    %cst_5 = arith.constant 0.000000e+00 : f32
    %22 = vector.broadcast %cst_5 : f32 to vector<2x1x256xf32>
    %23 = arith.subf %22, %21 : vector<2x1x256xf32>
    %24 = math.exp %23 : vector<2x1x256xf32>
    %cst_6 = arith.constant 1.000000e+00 : f32
    %25 = vector.broadcast %cst_6 : f32 to vector<2x1x256xf32>
    %26 = arith.addf %25, %24 : vector<2x1x256xf32>
    %27 = tpu.reciprocal %26 {approx = true} : vector<2x1x256xf32> -> vector<2x1x256xf32>
    %28 = vector.broadcast %27 : vector<2x1x256xf32> to vector<2x32x256xf32>
    %29 = arith.mulf %28, %6 : vector<2x32x256xf32>
    %c0_7 = arith.constant 0 : index
    %c0_8 = arith.constant 0 : index
    %30 = arith.index_cast %4 : i32 to index
    %31 = vector.load %arg4[%c0_7, %c0_8, %30] : memref<2x32x512xf32, #tpu.memory_space<vmem>>, vector<2x32x256xf32>
    tpu.vector_store %arg4[%c0_7, %c0_8, %30], %29 {strides = array<i32>} : memref<2x32x512xf32, #tpu.memory_space<vmem>>, vector<2x32x256xf32>,
    %c1_i32 = arith.constant 1 : i32
    %c256_i32_9 = arith.constant 256 : i32
    %32 = arith.muli %c1_i32, %c256_i32_9 : i32
    %33 = tpu.assume_multiple %32, 256 : i32
    %c0_10 = arith.constant 0 : index
    %c0_11 = arith.constant 0 : index
    %34 = arith.index_cast %33 : i32 to index
    %35 = vector.load %arg3[%c0_10, %c0_11, %34] : memref<2x32x512xf32, #tpu.memory_space<vmem>>, vector<2x32x256xf32>
    %cst_12 = arith.constant dense<0xFF800000> : vector<2x256xf32>
    %36 = vector.multi_reduction <maximumf>, %35, %cst_12 [1] : vector<2x32x256xf32> to vector<2x256xf32>
    %37 = vector.shape_cast %36 : vector<2x256xf32> to vector<2x1x256xf32>
    %cst_13 = arith.constant dense<0.000000e+00> : vector<2x256xf32>
    %38 = vector.multi_reduction <add>, %35, %cst_13 [1] : vector<2x32x256xf32> to vector<2x256xf32>
    %39 = vector.shape_cast %38 : vector<2x256xf32> to vector<2x1x256xf32>
    %cst_14 = arith.constant 3.125000e-02 : f32
    %40 = vector.broadcast %cst_14 : f32 to vector<2x1x256xf32>
    %41 = arith.mulf %39, %40 : vector<2x1x256xf32>
    %42 = vector.broadcast %0 : f32 to vector<2x1x256xf32>
    %43 = arith.mulf %42, %37 : vector<2x1x256xf32>
    %44 = vector.broadcast %1 : f32 to vector<2x1x256xf32>
    %45 = arith.mulf %44, %41 : vector<2x1x256xf32>
    %46 = arith.addf %43, %45 : vector<2x1x256xf32>
    %47 = vector.broadcast %2 : f32 to vector<2x1x256xf32>
    %48 = arith.addf %46, %47 : vector<2x1x256xf32>
    %cst_15 = arith.constant 0.000000e+00 : f32
    %49 = vector.broadcast %cst_15 : f32 to vector<2x1x256xf32>
    %50 = arith.maximumf %48, %49 : vector<2x1x256xf32>
    %cst_16 = arith.constant 0.000000e+00 : f32
    %51 = vector.broadcast %cst_16 : f32 to vector<2x1x256xf32>
    %52 = arith.subf %51, %50 : vector<2x1x256xf32>
    %53 = math.exp %52 : vector<2x1x256xf32>
    %cst_17 = arith.constant 1.000000e+00 : f32
    %54 = vector.broadcast %cst_17 : f32 to vector<2x1x256xf32>
    %55 = arith.addf %54, %53 : vector<2x1x256xf32>
    %56 = tpu.reciprocal %55 {approx = true} : vector<2x1x256xf32> -> vector<2x1x256xf32>
    %57 = vector.broadcast %56 : vector<2x1x256xf32> to vector<2x32x256xf32>
    %58 = arith.mulf %57, %35 : vector<2x32x256xf32>
    %c0_18 = arith.constant 0 : index
    %c0_19 = arith.constant 0 : index
    %59 = arith.index_cast %33 : i32 to index
    %60 = vector.load %arg4[%c0_18, %c0_19, %59] : memref<2x32x512xf32, #tpu.memory_space<vmem>>, vector<2x32x256xf32>
    tpu.vector_store %arg4[%c0_18, %c0_19, %59], %58 {strides = array<i32>} : memref<2x32x512xf32, #tpu.memory_space<vmem>>, vector<2x32x256xf32>,
    %c2_i32 = arith.constant 2 : i32
    return
  }
  func.func @transform_0(%arg0: i32, %arg1: i32, %arg2: memref<3xf32, #tpu.memory_space<smem>>) -> (i32, i32, i32) {
    %c0_i32 = arith.constant 0 : i32
    %c0_i32_0 = arith.constant 0 : i32
    return %arg0, %c0_i32, %arg1 : i32, i32, i32
  }
  func.func @transform_1(%arg0: i32, %arg1: i32, %arg2: memref<3xf32, #tpu.memory_space<smem>>) -> (i32, i32, i32) {
    %c0_i32 = arith.constant 0 : i32
    %c0_i32_0 = arith.constant 0 : i32
    return %arg0, %c0_i32, %arg1 : i32, i32, i32
  }
}

</mosaic_0001>

<llo_original>
// kernel: tpu_custom_call.1
$region0: #{tpu_custom_call.1}
  #allocation0 [shape = 'u32[]', space=smem, size = 0x4, offset = 0x4, fixed_abs, tag = 'smem constant byte address 0x4 - core index']
  #allocation1 [shape = 'u32[144,128]{1,0:T(1,128)}', space=vmem, size = 0x12000, scoped, tag = 'internal scratch']
  #allocation2 [shape = 's32[1]{0}', space=sflag, size = 0x4, scoped, tag = 'scoped memory for tpu_custom_call.1']
  #allocation3 [shape = 'u8[512]{0}', space=smem, size = 0x200, scoped, tag = 'prefetched SMEM operand 0']
  %s0 = inlined_call_operand.hbm [shape: f32[3], index: 0, kind: input, shape index: {}]
  %s1 = inlined_call_operand.hbm [shape: f32[2,32,512], index: 1, kind: input, shape index: {}]
  %s2 = inlined_call_operand.hbm [shape: f32[2,32,512], index: 2, kind: output, shape index: {}]
  %s3 = sld [smem:[#allocation0]]
  $region18: #{tpu_custom_call.1} parent=0
    _
  %s5 = ssub.s32 1, %s3
  %s6 = scalar_select 0, %s5, %s3
  %8 = dma.hbm_to_smem %s0, 16, [#allocation3], [#allocation2]
  %9 = dma.done [#allocation2], 16
  %10 = sfence
  $region1: #{tpu_custom_call.1} parent=0
    #allocation4 [shape = 'u8[131072]{0}', space=vmem, size = 0x20000, scoped, tag = 'input window, operand 1, single buffered']
    #allocation5 [shape = 's32[1]{0}', space=sflag, size = 0x4, scoped, tag = 'scoped memory for tpu_custom_call.1']
    #allocation6 [shape = 's32[1]{0}', space=sflag, size = 0x4, scoped, tag = 'scoped memory for tpu_custom_call.1']
    #allocation7 [shape = 'u8[131072]{0}', space=vmem, size = 0x20000, scoped, tag = 'output window, operand 0, single buffered']
    %11 = vsyncpa [#allocation5], 0
    %12 = vsyncpa [#allocation6], 0
    // Predicated region
    $region2: #{tpu_custom_call.1} parent=1 // pred_check
      _
    $region3: #{tpu_custom_call.1} parent=1 // pred_check_branch
      %14 = sbr.rel (0) target = $region5
    $region4: #{tpu_custom_call.1} parent=1 // pred_region
      %s16 = ssub.s32 4096, 4096
      %17 = vsyncadd [#allocation5], %s16
      %s18 = sshll.u32 [#allocation4], 4
      %s19 = int_to_ptr.vmem [resolvable:$true] %s18
      %24 = dma.hbm_to_vmem [thread:$0]  %s1, 4096, %s19, [#allocation5], 512, 512, 32
    $region5: #{tpu_custom_call.1} parent=1 // pred_fallthru
      _
    // Predicated region
    $region6: #{tpu_custom_call.1} parent=1 // pred_check
      _
    $region7: #{tpu_custom_call.1} parent=1 // pred_check_branch
      %26 = sbr.rel (0) target = $region9
    $region8: #{tpu_custom_call.1} parent=1 // pred_region
      %27 = dma.done [#allocation5], 4096
    $region9: #{tpu_custom_call.1} parent=1 // pred_fallthru
      _
    %s28 = sld [smem:[#allocation3]]
    %s29 = sld [smem:[#allocation3 + $0x1]]
    %s30 = sld [smem:[#allocation3 + $0x2]]
    %v31 = vld [vmem:[#allocation4] sm:$0xff]
    %v32 = vld [vmem:[#allocation4 + $0x8] sm:$0xff]
    %v33 = vld [vmem:[#allocation4 + $0x20] sm:$0xff]
    %v34 = vld [vmem:[#allocation4 + $0x28] sm:$0xff]
    %v35 = vld [vmem:[#allocation4 + $0x40] sm:$0xff]
    %v36 = vld [vmem:[#allocation4 + $0x48] sm:$0xff]
    %v37 = vld [vmem:[#allocation4 + $0x60] sm:$0xff]
    %v38 = vld [vmem:[#allocation4 + $0x68] sm:$0xff]
    %v39 = vld [vmem:[#allocation4 + $0x80] sm:$0xff]
    %v40 = vld [vmem:[#allocation4 + $0x88] sm:$0xff]
    %v41 = vld [vmem:[#allocation4 + $0xa0] sm:$0xff]
    %v42 = vld [vmem:[#allocation4 + $0xa8] sm:$0xff]
    %v43 = vld [vmem:[#allocation4 + $0xc0] sm:$0xff]
    %v44 = vld [vmem:[#allocation4 + $0xc8] sm:$0xff]
    %v45 = vld [vmem:[#allocation4 + $0xe0] sm:$0xff]
    %v46 = vld [vmem:[#allocation4 + $0xe8] sm:$0xff]
    %v47 = vmax.f32 %v31, %v33
    %v48 = vmax.f32 %v47, %v35
    %v49 = vmax.f32 %v48, %v37
    %v50 = vrot.slane %v49, 4
    %v51 = vmax.f32 %v49, %v50
    %v52 = vrot.slane %v51, 2
    %v53 = vmax.f32 %v51, %v52
    %v54 = vrot.slane %v53, 1
    %v55 = vmax.f32 %v53, %v54
    %v56 = vmax.f32 %v32, %v34
    %v57 = vmax.f32 %v56, %v36
    %v58 = vmax.f32 %v57, %v38
    %v59 = vrot.slane %v58, 4
    %v60 = vmax.f32 %v58, %v59
    %v61 = vrot.slane %v60, 2
    %v62 = vmax.f32 %v60, %v61
    %v63 = vrot.slane %v62, 1
    %v64 = vmax.f32 %v62, %v63
    %v65 = vmax.f32 %v39, %v41
    %v66 = vmax.f32 %v65, %v43
    %v67 = vmax.f32 %v66, %v45
    %v68 = vrot.slane %v67, 4
    %v69 = vmax.f32 %v67, %v68
    %v70 = vrot.slane %v69, 2
    %v71 = vmax.f32 %v69, %v70
    %v72 = vrot.slane %v71, 1
    %v73 = vmax.f32 %v71, %v72
    %v74 = vmax.f32 %v40, %v42
    %v75 = vmax.f32 %v74, %v44
    %v76 = vmax.f32 %v75, %v46
    %v77 = vrot.slane %v76, 4
    %v78 = vmax.f32 %v76, %v77
    %v79 = vrot.slane %v78, 2
    %v80 = vmax.f32 %v78, %v79
    %v81 = vrot.slane %v80, 1
    %v82 = vmax.f32 %v80, %v81
    %v83 = vadd.f32 %v31, %v33
    %v84 = vadd.f32 %v83, %v35
    %v85 = vadd.f32 %v84, %v37
    %v86 = vrot.slane %v85, 4
    %v87 = vadd.f32 %v85, %v86
    %v88 = vrot.slane %v87, 2
    %v89 = vadd.f32 %v87, %v88
    %v90 = vrot.slane %v89, 1
    %v91 = vadd.f32 %v89, %v90
    %v92 = vadd.f32 %v32, %v34
    %v93 = vadd.f32 %v92, %v36
    %v94 = vadd.f32 %v93, %v38
    %v95 = vrot.slane %v94, 4
    %v96 = vadd.f32 %v94, %v95
    %v97 = vrot.slane %v96, 2
    %v98 = vadd.f32 %v96, %v97
    %v99 = vrot.slane %v98, 1
    %v100 = vadd.f32 %v98, %v99
    %v101 = vadd.f32 %v39, %v41
    %v102 = vadd.f32 %v101, %v43
    %v103 = vadd.f32 %v102, %v45
    %v104 = vrot.slane %v103, 4
    %v105 = vadd.f32 %v103, %v104
    %v106 = vrot.slane %v105, 2
    %v107 = vadd.f32 %v105, %v106
    %v108 = vrot.slane %v107, 1
    %v109 = vadd.f32 %v107, %v108
    %v110 = vadd.f32 %v40, %v42
    %v111 = vadd.f32 %v110, %v44
    %v112 = vadd.f32 %v111, %v46
    %v113 = vrot.slane %v112, 4
    %v114 = vadd.f32 %v112, %v113
    %v115 = vrot.slane %v114, 2
    %v116 = vadd.f32 %v114, %v115
    %v117 = vrot.slane %v116, 1
    %v118 = vadd.f32 %v116, %v117
    %v119 = vmul.f32 %v91, 0.03125
    %v120 = vmul.f32 %v100, 0.03125
    %v121 = vmul.f32 %v109, 0.03125
    %v122 = vmul.f32 %v118, 0.03125
    %v123 = vstv %s28
    %v124 = vmul.f32 %v123, %v55
    %v125 = vmul.f32 %v123, %v64
    %v126 = vmul.f32 %v123, %v73
    %v127 = vmul.f32 %v123, %v82
    %v128 = vstv %s29
    %v129 = vmul.f32 %v128, %v119
    %v130 = vmul.f32 %v128, %v120
    %v131 = vmul.f32 %v128, %v121
    %v132 = vmul.f32 %v128, %v122
    %v133 = vadd.f32 %v124, %v129
    %v134 = vadd.f32 %v125, %v130
    %v135 = vadd.f32 %v126, %v131
    %v136 = vadd.f32 %v127, %v132
    %v137 = vstv %s30
    %v138 = vadd.f32 %v133, %v137
    %v139 = vadd.f32 %v134, %v137
    %v140 = vadd.f32 %v135, %v137
    %v141 = vadd.f32 %v136, %v137
    %v142 = vmax.f32 %v138, 0.0
    %v143 = vmax.f32 %v139, 0.0
    %v144 = vmax.f32 %v140, 0.0
    %v145 = vmax.f32 %v141, 0.0
    %v146 = vsub.f32 0.0, %v142
    %v147 = vsub.f32 0.0, %v143
    %v148 = vsub.f32 0.0, %v144
    %v149 = vsub.f32 0.0, %v145
    %v150 = vmul.f32 %v146, 1.442695
    %v151 = vpow.pop %v150
    %v152 = vmul.f32 %v147, 1.442695
    %v153 = vpow.pop %v152
    %v154 = vmul.f32 %v148, 1.442695
    %v155 = vpow.pop %v154
    %v156 = vmul.f32 %v149, 1.442695
    %v157 = vpow.pop %v156
    %v158 = vadd.f32 %v151, 1.0
    %v159 = vadd.f32 %v153, 1.0
    %v160 = vadd.f32 %v155, 1.0
    %v161 = vadd.f32 %v157, 1.0
    %v162 = vrcp.pop %v158
    %v163 = vrcp.pop %v159
    %v164 = vrcp.pop %v160
    %v165 = vrcp.pop %v161
    %v166 = vmul.f32 %v162, %v31
    %v167 = vmul.f32 %v163, %v32
    %v168 = vmul.f32 %v162, %v33
    %v169 = vmul.f32 %v163, %v34
    %v170 = vmul.f32 %v162, %v35
    %v171 = vmul.f32 %v163, %v36
    %v172 = vmul.f32 %v162, %v37
    %v173 = vmul.f32 %v163, %v38
    %v174 = vmul.f32 %v164, %v39
    %v175 = vmul.f32 %v165, %v40
    %v176 = vmul.f32 %v164, %v41
    %v177 = vmul.f32 %v165, %v42
    %v178 = vmul.f32 %v164, %v43
    %v179 = vmul.f32 %v165, %v44
    %v180 = vmul.f32 %v164, %v45
    %v181 = vmul.f32 %v165, %v46
    %182 = vst [vmem:[#allocation7] sm:$0xff] %v166
    %183 = vst [vmem:[#allocation7 + $0x8] sm:$0xff] %v167
    %184 = vst [vmem:[#allocation7 + $0x20] sm:$0xff] %v168
    %185 = vst [vmem:[#allocation7 + $0x28] sm:$0xff] %v169
    %186 = vst [vmem:[#allocation7 + $0x40] sm:$0xff] %v170
    %187 = vst [vmem:[#allocation7 + $0x48] sm:$0xff] %v171
    %188 = vst [vmem:[#allocation7 + $0x60] sm:$0xff] %v172
    %189 = vst [vmem:[#allocation7 + $0x68] sm:$0xff] %v173
    %190 = vst [vmem:[#allocation7 + $0x80] sm:$0xff] %v174
    %191 = vst [vmem:[#allocation7 + $0x88] sm:$0xff] %v175
    %192 = vst [vmem:[#allocation7 + $0xa0] sm:$0xff] %v176
    %193 = vst [vmem:[#allocation7 + $0xa8] sm:$0xff] %v177
    %194 = vst [vmem:[#allocation7 + $0xc0] sm:$0xff] %v178
    %195 = vst [vmem:[#allocation7 + $0xc8] sm:$0xff] %v179
    %196 = vst [vmem:[#allocation7 + $0xe0] sm:$0xff] %v180
    %197 = vst [vmem:[#allocation7 + $0xe8] sm:$0xff] %v181
    %s198 = scalar_lea.vmem [#allocation4], 16
    %v199 = vld [vmem:[%s198] sm:$0xff]
    %v200 = vld [vmem:[%s198 + $0x8] sm:$0xff]
    %v201 = vld [vmem:[%s198 + $0x20] sm:$0xff]
    %v202 = vld [vmem:[%s198 + $0x28] sm:$0xff]
    %v203 = vld [vmem:[%s198 + $0x40] sm:$0xff]
    %v204 = vld [vmem:[%s198 + $0x48] sm:$0xff]
    %v205 = vld [vmem:[%s198 + $0x60] sm:$0xff]
    %v206 = vld [vmem:[%s198 + $0x68] sm:$0xff]
    %v207 = vld [vmem:[%s198 + $0x80] sm:$0xff]
    %v208 = vld [vmem:[%s198 + $0x88] sm:$0xff]
    %v209 = vld [vmem:[%s198 + $0xa0] sm:$0xff]
    %v210 = vld [vmem:[%s198 + $0xa8] sm:$0xff]
    %v211 = vld [vmem:[%s198 + $0xc0] sm:$0xff]
    %v212 = vld [vmem:[%s198 + $0xc8] sm:$0xff]
    %v213 = vld [vmem:[%s198 + $0xe0] sm:$0xff]
    %v214 = vld [vmem:[%s198 + $0xe8] sm:$0xff]
    %v215 = vmax.f32 %v199, %v201
    %v216 = vmax.f32 %v215, %v203
    %v217 = vmax.f32 %v216, %v205
    %v218 = vrot.slane %v217, 4
    %v219 = vmax.f32 %v217, %v218
    %v220 = vrot.slane %v219, 2
    %v221 = vmax.f32 %v219, %v220
    %v222 = vrot.slane %v221, 1
    %v223 = vmax.f32 %v221, %v222
    %v224 = vmax.f32 %v200, %v202
    %v225 = vmax.f32 %v224, %v204
    %v226 = vmax.f32 %v225, %v206
    %v227 = vrot.slane %v226, 4
    %v228 = vmax.f32 %v226, %v227
    %v229 = vrot.slane %v228, 2
    %v230 = vmax.f32 %v228, %v229
    %v231 = vrot.slane %v230, 1
    %v232 = vmax.f32 %v230, %v231
    %v233 = vmax.f32 %v207, %v209
    %v234 = vmax.f32 %v233, %v211
    %v235 = vmax.f32 %v234, %v213
    %v236 = vrot.slane %v235, 4
    %v237 = vmax.f32 %v235, %v236
    %v238 = vrot.slane %v237, 2
    %v239 = vmax.f32 %v237, %v238
    %v240 = vrot.slane %v239, 1
    %v241 = vmax.f32 %v239, %v240
    %v242 = vmax.f32 %v208, %v210
    %v243 = vmax.f32 %v242, %v212
    %v244 = vmax.f32 %v243, %v214
    %v245 = vrot.slane %v244, 4
    %v246 = vmax.f32 %v244, %v245
    %v247 = vrot.slane %v246, 2
    %v248 = vmax.f32 %v246, %v247
    %v249 = vrot.slane %v248, 1
    %v250 = vmax.f32 %v248, %v249
    %v251 = vadd.f32 %v199, %v201
    %v252 = vadd.f32 %v251, %v203
    %v253 = vadd.f32 %v252, %v205
    %v254 = vrot.slane %v253, 4
    %v255 = vadd.f32 %v253, %v254
    %v256 = vrot.slane %v255, 2
    %v257 = vadd.f32 %v255, %v256
    %v258 = vrot.slane %v257, 1
    %v259 = vadd.f32 %v257, %v258
    %v260 = vadd.f32 %v200, %v202
    %v261 = vadd.f32 %v260, %v204
    %v262 = vadd.f32 %v261, %v206
    %v263 = vrot.slane %v262, 4
    %v264 = vadd.f32 %v262, %v263
    %v265 = vrot.slane %v264, 2
    %v266 = vadd.f32 %v264, %v265
    %v267 = vrot.slane %v266, 1
    %v268 = vadd.f32 %v266, %v267
    %v269 = vadd.f32 %v207, %v209
    %v270 = vadd.f32 %v269, %v211
    %v271 = vadd.f32 %v270, %v213
    %v272 = vrot.slane %v271, 4
    %v273 = vadd.f32 %v271, %v272
    %v274 = vrot.slane %v273, 2
    %v275 = vadd.f32 %v273, %v274
    %v276 = vrot.slane %v275, 1
    %v277 = vadd.f32 %v275, %v276
    %v278 = vadd.f32 %v208, %v210
    %v279 = vadd.f32 %v278, %v212
    %v280 = vadd.f32 %v279, %v214
    %v281 = vrot.slane %v280, 4
    %v282 = vadd.f32 %v280, %v281
    %v283 = vrot.slane %v282, 2
    %v284 = vadd.f32 %v282, %v283
    %v285 = vrot.slane %v284, 1
    %v286 = vadd.f32 %v284, %v285
    %v287 = vmul.f32 %v259, 0.03125
    %v288 = vmul.f32 %v268, 0.03125
    %v289 = vmul.f32 %v277, 0.03125
    %v290 = vmul.f32 %v286, 0.03125
    %v291 = vmul.f32 %v123, %v223
    %v292 = vmul.f32 %v123, %v232
    %v293 = vmul.f32 %v123, %v241
    %v294 = vmul.f32 %v123, %v250
    %v295 = vmul.f32 %v128, %v287
    %v296 = vmul.f32 %v128, %v288
    %v297 = vmul.f32 %v128, %v289
    %v298 = vmul.f32 %v128, %v290
    %v299 = vadd.f32 %v291, %v295
    %v300 = vadd.f32 %v292, %v296
    %v301 = vadd.f32 %v293, %v297
    %v302 = vadd.f32 %v294, %v298
    %v303 = vadd.f32 %v299, %v137
    %v304 = vadd.f32 %v300, %v137
    %v305 = vadd.f32 %v301, %v137
    %v306 = vadd.f32 %v302, %v137
    %v307 = vmax.f32 %v303, 0.0
    %v308 = vmax.f32 %v304, 0.0
    %v309 = vmax.f32 %v305, 0.0
    %v310 = vmax.f32 %v306, 0.0
    %v311 = vsub.f32 0.0, %v307
    %v312 = vsub.f32 0.0, %v308
    %v313 = vsub.f32 0.0, %v309
    %v314 = vsub.f32 0.0, %v310
    %v315 = vmul.f32 %v311, 1.442695
    %v316 = vpow.pop %v315
    %v317 = vmul.f32 %v312, 1.442695
    %v318 = vpow.pop %v317
    %v319 = vmul.f32 %v313, 1.442695
    %v320 = vpow.pop %v319
    %v321 = vmul.f32 %v314, 1.442695
    %v322 = vpow.pop %v321
    %v323 = vadd.f32 %v316, 1.0
    %v324 = vadd.f32 %v318, 1.0
    %v325 = vadd.f32 %v320, 1.0
    %v326 = vadd.f32 %v322, 1.0
    %v327 = vrcp.pop %v323
    %v328 = vrcp.pop %v324
    %v329 = vrcp.pop %v325
    %v330 = vrcp.pop %v326
    %v331 = vmul.f32 %v327, %v199
    %v332 = vmul.f32 %v328, %v200
    %v333 = vmul.f32 %v327, %v201
    %v334 = vmul.f32 %v328, %v202
    %v335 = vmul.f32 %v327, %v203
    %v336 = vmul.f32 %v328, %v204
    %v337 = vmul.f32 %v327, %v205
    %v338 = vmul.f32 %v328, %v206
    %v339 = vmul.f32 %v329, %v207
    %v340 = vmul.f32 %v330, %v208
    %v341 = vmul.f32 %v329, %v209
    %v342 = vmul.f32 %v330, %v210
    %v343 = vmul.f32 %v329, %v211
    %v344 = vmul.f32 %v330, %v212
    %v345 = vmul.f32 %v329, %v213
    %v346 = vmul.f32 %v330, %v214
    %s347 = scalar_lea.vmem [#allocation7], 16
    %348 = vst [vmem:[%s347] sm:$0xff] %v331
    %349 = vst [vmem:[%s347 + $0x8] sm:$0xff] %v332
    %350 = vst [vmem:[%s347 + $0x20] sm:$0xff] %v333
    %351 = vst [vmem:[%s347 + $0x28] sm:$0xff] %v334
    %352 = vst [vmem:[%s347 + $0x40] sm:$0xff] %v335
    %353 = vst [vmem:[%s347 + $0x48] sm:$0xff] %v336
    %354 = vst [vmem:[%s347 + $0x60] sm:$0xff] %v337
    %355 = vst [vmem:[%s347 + $0x68] sm:$0xff] %v338
    %356 = vst [vmem:[%s347 + $0x80] sm:$0xff] %v339
    %357 = vst [vmem:[%s347 + $0x88] sm:$0xff] %v340
    %358 = vst [vmem:[%s347 + $0xa0] sm:$0xff] %v341
    %359 = vst [vmem:[%s347 + $0xa8] sm:$0xff] %v342
    %360 = vst [vmem:[%s347 + $0xc0] sm:$0xff] %v343
    %361 = vst [vmem:[%s347 + $0xc8] sm:$0xff] %v344
    %362 = vst [vmem:[%s347 + $0xe0] sm:$0xff] %v345
    %363 = vst [vmem:[%s347 + $0xe8] sm:$0xff] %v346
    // Predicated region
    $region10: #{tpu_custom_call.1} parent=1 // pred_check
      _
    $region11: #{tpu_custom_call.1} parent=1 // pred_check_branch
      %365 = sbr.rel (0) target = $region13
    $region12: #{tpu_custom_call.1} parent=1 // pred_region
      %s367 = ssub.s32 4096, 4096
      %368 = vsyncadd [#allocation6], %s367
      %s369 = sshll.u32 [#allocation7], 4
      %s370 = int_to_ptr.vmem [resolvable:$true] %s369
      %375 = dma.vmem_to_hbm [thread:$0]  %s370, 4096, %s2, [#allocation6], 512, 512, 32
    $region13: #{tpu_custom_call.1} parent=1 // pred_fallthru
      _
    // Predicated region
    $region14: #{tpu_custom_call.1} parent=1 // pred_check
      _
    $region15: #{tpu_custom_call.1} parent=1 // pred_check_branch
      %377 = sbr.rel (0) target = $region17
    $region16: #{tpu_custom_call.1} parent=1 // pred_region
      %378 = dma.done [#allocation6], 4096
    $region17: #{tpu_custom_call.1} parent=1 // pred_fallthru
      _
    %379 = vsyncpa [#allocation5], 1
    %380 = vsyncpa [#allocation6], 1

</llo_original>
